<compile_context>
chip_gen: v7x
topology: tpu7x:2x2x1
jax: 0.10.0
libtpu: 0.0.40
codegen_flags: <defaults>
</compile_context>

<pallas_src>
import functools

import jax
import jax.numpy as jnp
from jax import lax
from jax.experimental import pallas as pl
from jax.experimental.pallas import tpu as pltpu


def _round_up(x, m):
    return (x + m - 1) // m * m


# ----------------------------------------------------------------------------
# Pallas kernel: one (batch tile, time tile) grid step of the LSTM + head.
# ----------------------------------------------------------------------------
def _dkt_lstm_kernel(xemb_ref,   # (TL, TB, E)      mxu dtype
                     w_ih_ref,   # (E, GW)          mxu dtype
                     w_hh_ref,   # (GS, GW)         mxu dtype
                     b_ref,      # (1, GW)          f32 (b_ih + b_hh, padded)
                     w_out_ref,  # (GS, CP)         mxu dtype
                     b_out_ref,  # (1, CP)          f32
                     y_ref,      # (TL, TB, CP)     mxu dtype output
                     xproj_ref,  # scratch (TL, TB, GW)  mxu dtype
                     hseq_ref,   # scratch (TL, TB, GS)  mxu dtype
                     h_ref,      # scratch (TB, GS) f32 (persists across time tiles)
                     c_ref,      # scratch (TB, GS) f32
                     *, unroll):
    TL, TB, E = xemb_ref.shape
    GS, GW = w_hh_ref.shape          # GS = gate stride (= H when packed)
    CP = w_out_ref.shape[1]

    # Reset recurrent state at the first time tile of each batch tile.
    @pl.when(pl.program_id(1) == 0)
    def _():
        h_ref[...] = jnp.zeros(h_ref.shape, h_ref.dtype)
        c_ref[...] = jnp.zeros(c_ref.shape, c_ref.dtype)

    # ---- Prologue: hoisted input projection (+ fused bias) as ONE big matmul.
    x_all = xemb_ref[...].reshape(TL * TB, E)
    xproj = jnp.dot(x_all, w_ih_ref[...], preferred_element_type=jnp.float32)
    xproj_ref[...] = (xproj + b_ref[...]).reshape(TL, TB, GW).astype(xproj_ref.dtype)

    w_hh = w_hh_ref[...]

    # Per-lane activation constants (hoisted out of the recurrence):
    #   g-gate lanes:   tanh(x)
    #   i/f/o lanes:    sigmoid(x) = 0.5*tanh(0.5*x) + 0.5
    # so every step does a SINGLE EUP (tanh) pass over all gate lanes.
    lane = lax.broadcasted_iota(jnp.int32, (1, GW), 1)
    is_g = (lane >= 2 * GS) & (lane < 3 * GS)
    a_scale = jnp.where(is_g, 1.0, 0.5).astype(jnp.float32)
    a_off = jnp.where(is_g, 0.0, 0.5).astype(jnp.float32)

    # ---- Serial recurrence: only h @ W_hh remains on the critical path.
    def one_step(t, carry):
        h, c = carry
        gates = xproj_ref[t] + jnp.dot(h.astype(w_hh.dtype), w_hh,
                                       preferred_element_type=jnp.float32)
        act = jnp.tanh(gates * a_scale) * a_scale + a_off
        i_g = act[:, 0 * GS:1 * GS]      # PyTorch gate order: i, f, g, o
        f_g = act[:, 1 * GS:2 * GS]
        g_g = act[:, 2 * GS:3 * GS]
        o_g = act[:, 3 * GS:4 * GS]
        c_new = f_g * c + i_g * g_g
        h_new = o_g * jnp.tanh(c_new)
        hseq_ref[t] = h_new.astype(hseq_ref.dtype)
        return h_new, c_new

    def unrolled(i, carry):
        base = i * unroll
        for u in range(unroll):          # manual unroll for LLO visibility
            carry = one_step(base + u, carry)
        return carry

    carry = (h_ref[...], c_ref[...])
    n_main = TL // unroll
    carry = lax.fori_loop(0, n_main, unrolled, carry)
    carry = lax.fori_loop(n_main * unroll, TL, one_step, carry)   # tail (empty)
    h_ref[...] = carry[0]
    c_ref[...] = carry[1]

    # ---- Epilogue: deferred output projection + sigmoid, lane-dense bf16 store.
    # Dropout is identity in eval mode (deterministic forward).
    h_all = hseq_ref[...].reshape(TL * TB, GS)
    logits = jnp.dot(h_all, w_out_ref[...], preferred_element_type=jnp.float32)
    y = 0.5 * jnp.tanh(0.5 * (logits + b_out_ref[...])) + 0.5
    y_ref[...] = y.reshape(TL, TB, CP).astype(y_ref.dtype)


# ----------------------------------------------------------------------------
# Wrapper
# ----------------------------------------------------------------------------
@functools.partial(jax.jit, static_argnames=("num_c", "mxu_dtype"))
def dkt_forward(q, r, params, *, num_c, mxu_dtype=jnp.bfloat16):
    """Full DKT forward. q, r: (B, L) int32. Returns (B, L, num_c) in mxu_dtype."""
    emb = params["emb"]          # (2*num_c, E)
    w_ih = params["w_ih"]        # (4H, E)  PyTorch layout
    w_hh = params["w_hh"]        # (4H, H)
    b_ih = params["b_ih"]        # (4H,)
    b_hh = params["b_hh"]        # (4H,)
    w_out = params["w_out"]      # (C, H)
    b_out = params["b_out"]      # (C,)

    B, L = q.shape
    E = emb.shape[1]
    H = w_hh.shape[1]
    C = w_out.shape[0]

    # Gate layout: pack all four gates into one 128-lane slab when they fit
    # (GS = H, cutting the per-step recurrent matmul ~4x); otherwise fall back
    # to per-gate padding to 128 lanes (GS = round_up(H, 128), aligned slices).
    GS = H if 4 * H <= 128 else _round_up(H, 128)
    GW = _round_up(4 * GS, 128)
    CP = _round_up(C, 128)

    # --- Generation-aware VMEM budget & tile selection. ---
    try:
        info = pltpu.get_tpu_info()
        vmem_cap = int(getattr(info, "vmem_capacity_bytes", 64 * 1024 * 1024))
    except Exception:
        vmem_cap = 64 * 1024 * 1024                      # conservative (v7x)
    budget = int(vmem_cap * 0.8)                         # headroom for Mosaic temps
    small_vmem = vmem_cap < 100 * 1024 * 1024            # v7x-class: 2 TCs, 64 MiB

    tb_cap = 128 if small_vmem else 256                  # 256-row LHS fills v6e MXU
    TB = min(_round_up(B, 8), tb_cap)
    if small_vmem and B >= 16 and _round_up(B, TB) == TB:
        # v7x megacore: make sure the 'parallel' batch axis spans both cores.
        TB = _round_up((TB + 1) // 2, 8)
    BP = _round_up(B, TB)

    # Time tile: minimize padded length (padded steps cost real serial time).
    n_t0 = -(-L // 128)
    TL = _round_up(-(-L // n_t0), 8)
    LP = _round_up(L, TL)

    wsz = jnp.dtype(mxu_dtype).itemsize

    def vmem_est(tb, tl):
        return (2 * tl * tb * E * wsz                              # xemb blocks
                + 2 * tl * tb * CP * wsz                           # y blocks
                + 2 * (E * GW + GS * GW + GS * CP) * wsz           # weights
                + 2 * (GW + CP) * 4                                # biases
                + tl * tb * GW * wsz + tl * tb * GS * wsz          # xproj / hseq
                + 2 * tb * GS * 4                                  # h / c carries
                + tl * tb * GW * 4 + tl * tb * CP * 4              # f32 matmul temps
                + 2 * 1024 * 1024)                                 # Mosaic slack

    while vmem_est(TB, TL) > budget and TL > 8:
        TL = max(8, _round_up(TL // 2, 8))
        LP = _round_up(L, TL)
    while vmem_est(TB, TL) > budget and TB > 8:
        TB = max(8, _round_up(TB // 2, 8))
        BP = _round_up(B, TB)

    # Vreg-pressure control: gates tensor (TB, GW) f32 should stay <= ~16 vregs.
    unroll = 4 if TB * GW <= 16 * 1024 else 2

    # --- Embedding gather fused with the time-major transpose (bf16 stream). ---
    # TODO(synk): arbitrary-index embedding gather has no clean BlockSpec
    #             expression; done in plain JAX (XLA gather).
    x_idx = (q + num_c * r).astype(jnp.int32)                  # (B, L)
    xemb = jnp.take(emb, x_idx.T, axis=0).astype(mxu_dtype)    # (L, B, E)
    xemb = jnp.pad(xemb, ((0, LP - L), (0, BP - B), (0, 0)))   # (LP, BP, E)

    # --- Weight prep: transpose to (in, out), gate-pack / zero-pad, cast. ---
    def pad_gates(a):  # (..., 4*H) -> (..., GW), gate order i,f,g,o preserved
        a4 = a.reshape(a.shape[:-1] + (4, H))
        a4 = jnp.pad(a4, [(0, 0)] * (a4.ndim - 1) + [(0, GS - H)])
        a2 = a4.reshape(a.shape[:-1] + (4 * GS,))
        return jnp.pad(a2, [(0, 0)] * (a2.ndim - 1) + [(0, GW - 4 * GS)])

    w_ih_p = pad_gates(w_ih.T).astype(mxu_dtype)                               # (E, GW)
    w_hh_p = jnp.pad(pad_gates(w_hh.T), ((0, GS - H), (0, 0))).astype(mxu_dtype)  # (GS, GW)
    b_p = pad_gates((b_ih + b_hh)[None, :]).astype(jnp.float32)                # (1, GW)
    w_out_p = jnp.pad(w_out.T, ((0, GS - H), (0, CP - C))).astype(mxu_dtype)   # (GS, CP)
    b_out_p = jnp.pad(b_out[None, :].astype(jnp.float32), ((0, 0), (0, CP - C)))

    n_b, n_t = BP // TB, LP // TL

    # TODO(synk): weight specs could use pipeline_mode=pl.Buffered(1) (constant
    #             index_map) to drop their second buffer; negligible at H<=128.
    grid_spec = pltpu.PrefetchScalarGridSpec(
        num_scalar_prefetch=0,
        grid=(n_b, n_t),
        in_specs=[
            pl.BlockSpec((TL, TB, E), lambda b, t: (t, b, 0)),
            pl.BlockSpec((E, GW), lambda b, t: (0, 0)),
            pl.BlockSpec((GS, GW), lambda b, t: (0, 0)),
            pl.BlockSpec((1, GW), lambda b, t: (0, 0)),
            pl.BlockSpec((GS, CP), lambda b, t: (0, 0)),
            pl.BlockSpec((1, CP), lambda b, t: (0, 0)),
        ],
        out_specs=pl.BlockSpec((TL, TB, CP), lambda b, t: (t, b, 0)),
        scratch_shapes=[
            pltpu.VMEM((TL, TB, GW), mxu_dtype),   # hoisted input projection
            pltpu.VMEM((TL, TB, GS), mxu_dtype),   # per-tile hidden states
            pltpu.VMEM((TB, GS), jnp.float32),     # h carry across time tiles
            pltpu.VMEM((TB, GS), jnp.float32),     # c carry across time tiles
        ],
    )

    y_tm = pl.pallas_call(
        functools.partial(_dkt_lstm_kernel, unroll=unroll),
        out_shape=jax.ShapeDtypeStruct((LP, BP, CP), mxu_dtype),
        grid_spec=grid_spec,
        compiler_params=pltpu.CompilerParams(
            dimension_semantics=("parallel", "arbitrary"),
            vmem_limit_bytes=budget),
    )(xemb, w_ih_p, w_hh_p, b_p, w_out_p, b_out_p)

    # TODO(synk): the batch-first reorder is still a wrapper-side XLA pass (on
    #             bf16, half the old cost); moving it in-kernel would save one
    #             more HBM round trip of the output.
    return jnp.transpose(y_tm[:L, :B, :C], (1, 0, 2))     # (B, L, C) batch-first


# ----------------------------------------------------------------------------
# Pure-JAX reference (f32) for correctness checking.
# ----------------------------------------------------------------------------
def _dkt_reference(q, r, params, *, num_c):
    emb, w_ih, w_hh = params["emb"], params["w_ih"], params["w_hh"]
    b = params["b_ih"] + params["b_hh"]
    w_out, b_out = params["w_out"], params["b_out"]
    B = q.shape[0]
    H = w_hh.shape[1]
    x_idx = q + num_c * r
    xemb = jnp.take(emb, x_idx, axis=0)                     # (B, L, E)

    def step(carry, x_t):
        h, c = carry
        gates = x_t @ w_ih.T + h @ w_hh.T + b
        i_g, f_g, g_g, o_g = jnp.split(gates, 4, axis=-1)
        c = jax.nn.sigmoid(f_g) * c + jax.nn.sigmoid(i_g) * jnp.tanh(g_g)
        h = jax.nn.sigmoid(o_g) * jnp.tanh(c)
        return (h, c), h

    h0 = jnp.zeros((B, H), jnp.float32)
    c0 = jnp.zeros((B, H), jnp.float32)
    _, hs = lax.scan(step, (h0, c0), jnp.transpose(xemb, (1, 0, 2)))
    hs = jnp.transpose(hs, (1, 0, 2))                       # (B, L, H)
    return jax.nn.sigmoid(hs @ w_out.T + b_out)


def init_params(key, num_c, emb_size):
    """Deterministic synthetic params in PyTorch DKT layouts."""
    H = emb_size
    E = emb_size
    ks = jax.random.split(key, 7)
    scale = 1.0 / jnp.sqrt(H)
    return {
        "emb": jax.random.normal(ks[0], (num_c * 2, E), jnp.float32),
        "w_ih": jax.random.uniform(ks[1], (4 * H, E), jnp.float32, -scale, scale),
        "w_hh": jax.random.uniform(ks[2], (4 * H, H), jnp.float32, -scale, scale),
        "b_ih": jax.random.uniform(ks[3], (4 * H,), jnp.float32, -scale, scale),
        "b_hh": jax.random.uniform(ks[4], (4 * H,), jnp.float32, -scale, scale),
        "w_out": jax.random.uniform(ks[5], (num_c, H), jnp.float32, -scale, scale),
        "b_out": jax.random.uniform(ks[6], (num_c,), jnp.float32, -scale, scale),
    }


if __name__ == "__main__":
    # Config 1: default DKT-like sizes -> packed-gate path (4*H <= 128).
    num_c = 50      # number of concepts
    emb_size = 32   # embedding == hidden size
    B, L = 2, 8     # batch, sequence length

    key = jax.random.PRNGKey(0)
    kq, kr, kp, k2 = jax.random.split(key, 4)
    q = jax.random.randint(kq, (B, L), 0, num_c, dtype=jnp.int32)
    r = jax.random.randint(kr, (B, L), 0, 2, dtype=jnp.int32)
    params = init_params(kp, num_c, emb_size)

    # Default path: bf16 MXU inputs + bf16 streamed tensors, f32 gate math.
    y = jax.block_until_ready(dkt_forward(q, r, params, num_c=num_c))
    # f32 path (exercises the dtype-generic code path, near-exact).
    y_f32 = jax.block_until_ready(
        dkt_forward(q, r, params, num_c=num_c, mxu_dtype=jnp.float32))
    y_ref = jax.block_until_ready(_dkt_reference(q, r, params, num_c=num_c))

    assert y.shape == (B, L, num_c), y.shape
    assert bool(jnp.all(jnp.isfinite(y.astype(jnp.float32))))
    assert bool(jnp.all((y >= 0.0) & (y <= 1.0)))
    assert bool(jnp.allclose(y_f32, y_ref, atol=2e-2)), "f32 kernel mismatch"
    assert bool(jnp.allclose(y.astype(jnp.float32), y_ref, atol=1e-1)), \
        "bf16 kernel mismatch"

    # Config 2: 4*H > 128 -> exercises the per-gate-padded (unpacked) path.
    num_c2, emb2, B2, L2 = 40, 48, 3, 10
    kq2, kr2, kp2 = jax.random.split(k2, 3)
    q2 = jax.random.randint(kq2, (B2, L2), 0, num_c2, dtype=jnp.int32)
    r2 = jax.random.randint(kr2, (B2, L2), 0, 2, dtype=jnp.int32)
    params2 = init_params(kp2, num_c2, emb2)
    y2 = jax.block_until_ready(dkt_forward(q2, r2, params2, num_c=num_c2))
    y2_ref = jax.block_until_ready(_dkt_reference(q2, r2, params2, num_c=num_c2))
    assert y2.shape == (B2, L2, num_c2)
    assert bool(jnp.allclose(y2.astype(jnp.float32), y2_ref, atol=1e-1)), \
        "unpacked-path mismatch"

    print("KERNEL_OK")
</pallas_src>

<mosaic_0001>
module attributes {stable_mosaic.version = 11 : i64} {
  func.func @_dkt_lstm_kernel(%arg0: i32, %arg1: i32, %arg2: memref<8x8x32xbf16, #tpu.memory_space<vmem>>, %arg3: memref<32x128xbf16, #tpu.memory_space<vmem>>, %arg4: memref<32x128xbf16, #tpu.memory_space<vmem>>, %arg5: memref<1x128xf32, #tpu.memory_space<vmem>>, %arg6: memref<32x128xbf16, #tpu.memory_space<vmem>>, %arg7: memref<1x128xf32, #tpu.memory_space<vmem>>, %arg8: memref<8x8x128xbf16, #tpu.memory_space<vmem>>, %arg9: memref<8x8x128xbf16, #tpu.memory_space<vmem>>, %arg10: memref<8x8x32xbf16, #tpu.memory_space<vmem>>, %arg11: memref<8x32xf32, #tpu.memory_space<vmem>>, %arg12: memref<8x32xf32, #tpu.memory_space<vmem>>) attributes {dimension_semantics = [#tpu.dimension_semantics<parallel>, #tpu.dimension_semantics<arbitrary>], iteration_bounds = array<i64: 1, 1>, scalar_prefetch = 0 : i64, scratch_operands = 4 : i64, tpu.core_type = #tpu.core_type<tc>, window_params = [{transform_indices = @transform_0, window_bounds = array<i64: 8, 8, 32>}, {pipeline_mode = #tpu.pipeline_mode<synchronous>, transform_indices = @transform_1, window_bounds = array<i64: 32, 128>}, {pipeline_mode = #tpu.pipeline_mode<synchronous>, transform_indices = @transform_2, window_bounds = array<i64: 32, 128>}, {pipeline_mode = #tpu.pipeline_mode<synchronous>, transform_indices = @transform_3, window_bounds = array<i64: 1, 128>}, {pipeline_mode = #tpu.pipeline_mode<synchronous>, transform_indices = @transform_4, window_bounds = array<i64: 32, 128>}, {pipeline_mode = #tpu.pipeline_mode<synchronous>, transform_indices = @transform_5, window_bounds = array<i64: 1, 128>}, {transform_indices = @transform_6, window_bounds = array<i64: 8, 8, 128>}]} {
    %c0_i32 = arith.constant 0 : i32
    %0 = arith.cmpi eq, %arg1, %c0_i32 : i32
    %1 = arith.extui %0 : i1 to i32
    %c0_i32_0 = arith.constant 0 : i32
    %2 = arith.cmpi ne, %1, %c0_i32_0 : i32
    scf.if %2 {
      %cst_43 = arith.constant 0.000000e+00 : f32
      %51 = vector.broadcast %cst_43 : f32 to vector<8x32xf32>
      %c0_44 = arith.constant 0 : index
      %c0_45 = arith.constant 0 : index
      %52 = vector.load %arg11[%c0_44, %c0_45] : memref<8x32xf32, #tpu.memory_space<vmem>>, vector<8x32xf32>
      tpu.vector_store %arg11[%c0_44, %c0_45], %51 {strides = array<i32>} : memref<8x32xf32, #tpu.memory_space<vmem>>, vector<8x32xf32>,
      %cst_46 = arith.constant 0.000000e+00 : f32
      %53 = vector.broadcast %cst_46 : f32 to vector<8x32xf32>
      %c0_47 = arith.constant 0 : index
      %c0_48 = arith.constant 0 : index
      %54 = vector.load %arg12[%c0_47, %c0_48] : memref<8x32xf32, #tpu.memory_space<vmem>>, vector<8x32xf32>
      tpu.vector_store %arg12[%c0_47, %c0_48], %53 {strides = array<i32>} : memref<8x32xf32, #tpu.memory_space<vmem>>, vector<8x32xf32>,
    } else {
    }
    %c0 = arith.constant 0 : index
    %c0_1 = arith.constant 0 : index
    %c0_2 = arith.constant 0 : index
    %3 = vector.load %arg2[%c0, %c0_1, %c0_2] : memref<8x8x32xbf16, #tpu.memory_space<vmem>>, vector<8x8x32xbf16>
    %4 = vector.shape_cast %3 : vector<8x8x32xbf16> to vector<64x32xbf16>
    %c0_3 = arith.constant 0 : index
    %c0_4 = arith.constant 0 : index
    %5 = vector.load %arg3[%c0_3, %c0_4] : memref<32x128xbf16, #tpu.memory_space<vmem>>, vector<32x128xbf16>
    %cst = arith.constant dense<0.000000e+00> : vector<64x128xf32>
    %6 = tpu.matmul %4, %5, %cst {dimension_numbers = #tpu.dot_dimension_numbers<[1], [0], [0], [1], [0, 0, 1, 1], [], []>} : vector<64x32xbf16>, vector<32x128xbf16>, vector<64x128xf32> -> vector<64x128xf32>
    %c0_5 = arith.constant 0 : index
    %c0_6 = arith.constant 0 : index
    %7 = vector.load %arg5[%c0_5, %c0_6] : memref<1x128xf32, #tpu.memory_space<vmem>>, vector<1x128xf32>
    %8 = vector.broadcast %7 : vector<1x128xf32> to vector<64x128xf32>
    %9 = arith.addf %6, %8 : vector<64x128xf32>
    %10 = vector.shape_cast %9 : vector<64x128xf32> to vector<8x8x128xf32>
    %11 = arith.truncf %10 : vector<8x8x128xf32> to vector<8x8x128xbf16>
    %c0_7 = arith.constant 0 : index
    %c0_8 = arith.constant 0 : index
    %c0_9 = arith.constant 0 : index
    %12 = vector.load %arg9[%c0_7, %c0_8, %c0_9] : memref<8x8x128xbf16, #tpu.memory_space<vmem>>, vector<8x8x128xbf16>
    tpu.vector_store %arg9[%c0_7, %c0_8, %c0_9], %11 {strides = array<i32>} : memref<8x8x128xbf16, #tpu.memory_space<vmem>>, vector<8x8x128xbf16>,
    %c0_10 = arith.constant 0 : index
    %c0_11 = arith.constant 0 : index
    %13 = vector.load %arg4[%c0_10, %c0_11] : memref<32x128xbf16, #tpu.memory_space<vmem>>, vector<32x128xbf16>
    %14 = tpu.iota {dimensions = array<i32: 1>} : vector<1x128xi32>
    %c64_i32 = arith.constant 64 : i32
    %15 = vector.broadcast %c64_i32 : i32 to vector<1x128xi32>
    %16 = arith.cmpi sge, %14, %15 : vector<1x128xi32>
    %c96_i32 = arith.constant 96 : i32
    %17 = vector.broadcast %c96_i32 : i32 to vector<1x128xi32>
    %18 = arith.cmpi slt, %14, %17 : vector<1x128xi32>
    %19 = arith.andi %16, %18 : vector<1x128xi1>
    %cst_12 = arith.constant 1.000000e+00 : f32
    %cst_13 = arith.constant 5.000000e-01 : f32
    %20 = vector.broadcast %cst_12 : f32 to vector<1x128xf32>
    %21 = vector.broadcast %cst_13 : f32 to vector<1x128xf32>
    %22 = arith.select %19, %20, %21 : vector<1x128xi1>, vector<1x128xf32>
    %cst_14 = arith.constant 0.000000e+00 : f32
    %cst_15 = arith.constant 5.000000e-01 : f32
    %23 = vector.broadcast %cst_14 : f32 to vector<1x128xf32>
    %24 = vector.broadcast %cst_15 : f32 to vector<1x128xf32>
    %25 = arith.select %19, %23, %24 : vector<1x128xi1>, vector<1x128xf32>
    %c0_16 = arith.constant 0 : index
    %c0_17 = arith.constant 0 : index
    %26 = vector.load %arg11[%c0_16, %c0_17] : memref<8x32xf32, #tpu.memory_space<vmem>>, vector<8x32xf32>
    %c0_18 = arith.constant 0 : index
    %c0_19 = arith.constant 0 : index
    %27 = vector.load %arg12[%c0_18, %c0_19] : memref<8x32xf32, #tpu.memory_space<vmem>>, vector<8x32xf32>
    %c0_i32_20 = arith.constant 0 : i32
    %c2_i32 = arith.constant 2 : i32
    %28 = arith.addi %c0_i32_20, %c2_i32 : i32
    %c1_i32 = arith.constant 1 : i32
    %29:2 = scf.for %arg13 = %c0_i32_20 to %28 step %c1_i32 iter_args(%arg14 = %26, %arg15 = %27) -> (vector<8x32xf32>, vector<8x32xf32>)  : i32 {
      %c4_i32 = arith.constant 4 : i32
      %51 = arith.muli %arg13, %c4_i32 : i32
      %c0_i32_43 = arith.constant 0 : i32
      %52 = arith.addi %51, %c0_i32_43 : i32
      %53 = arith.index_cast %52 : i32 to index
      %c0_44 = arith.constant 0 : index
      %c0_45 = arith.constant 0 : index
      %54 = vector.load %arg9[%53, %c0_44, %c0_45] : memref<8x8x128xbf16, #tpu.memory_space<vmem>>, vector<1x8x128xbf16>
      %55 = vector.shape_cast %54 : vector<1x8x128xbf16> to vector<8x128xbf16>
      %56 = arith.truncf %arg14 : vector<8x32xf32> to vector<8x32xbf16>
      %cst_46 = arith.constant dense<0.000000e+00> : vector<8x128xf32>
      %57 = tpu.matmul %56, %13, %cst_46 {dimension_numbers = #tpu.dot_dimension_numbers<[1], [0], [0], [1], [0, 0, 1, 1], [], []>} : vector<8x32xbf16>, vector<32x128xbf16>, vector<8x128xf32> -> vector<8x128xf32>
      %58 = arith.extf %55 : vector<8x128xbf16> to vector<8x128xf32>
      %59 = arith.addf %58, %57 : vector<8x128xf32>
      %60 = vector.broadcast %22 : vector<1x128xf32> to vector<8x128xf32>
      %61 = arith.mulf %59, %60 : vector<8x128xf32>
      %62 = math.tanh %61 : vector<8x128xf32>
      %63 = vector.broadcast %22 : vector<1x128xf32> to vector<8x128xf32>
      %64 = arith.mulf %62, %63 : vector<8x128xf32>
      %65 = vector.broadcast %25 : vector<1x128xf32> to vector<8x128xf32>
      %66 = arith.addf %64, %65 : vector<8x128xf32>
      %67 = vector.extract_strided_slice %66 {offsets = [0, 0], sizes = [8, 32], strides = [1, 1]} : vector<8x128xf32> to vector<8x32xf32>
      %68 = vector.extract_strided_slice %66 {offsets = [0, 32], sizes = [8, 32], strides = [1, 1]} : vector<8x128xf32> to vector<8x32xf32>
      %69 = vector.extract_strided_slice %66 {offsets = [0, 64], sizes = [8, 32], strides = [1, 1]} : vector<8x128xf32> to vector<8x32xf32>
      %70 = vector.extract_strided_slice %66 {offsets = [0, 96], sizes = [8, 32], strides = [1, 1]} : vector<8x128xf32> to vector<8x32xf32>
      %71 = arith.mulf %68, %arg15 : vector<8x32xf32>
      %72 = arith.mulf %67, %69 : vector<8x32xf32>
      %73 = arith.addf %71, %72 : vector<8x32xf32>
      %74 = math.tanh %73 : vector<8x32xf32>
      %75 = arith.mulf %70, %74 : vector<8x32xf32>
      %76 = arith.truncf %75 : vector<8x32xf32> to vector<8x32xbf16>
      %77 = arith.index_cast %52 : i32 to index
      %c0_47 = arith.constant 0 : index
      %c0_48 = arith.constant 0 : index
      %78 = vector.load %arg10[%77, %c0_47, %c0_48] : memref<8x8x32xbf16, #tpu.memory_space<vmem>>, vector<1x8x32xbf16>
      %79 = vector.shape_cast %78 : vector<1x8x32xbf16> to vector<8x32xbf16>
      %80 = vector.shape_cast %76 : vector<8x32xbf16> to vector<1x8x32xbf16>
      tpu.vector_store %arg10[%77, %c0_47, %c0_48], %80 {strides = array<i32>} : memref<8x8x32xbf16, #tpu.memory_space<vmem>>, vector<1x8x32xbf16>,
      %c1_i32_49 = arith.constant 1 : i32
      %81 = arith.addi %51, %c1_i32_49 : i32
      %82 = arith.index_cast %81 : i32 to index
      %c0_50 = arith.constant 0 : index
      %c0_51 = arith.constant 0 : index
      %83 = vector.load %arg9[%82, %c0_50, %c0_51] : memref<8x8x128xbf16, #tpu.memory_space<vmem>>, vector<1x8x128xbf16>
      %84 = vector.shape_cast %83 : vector<1x8x128xbf16> to vector<8x128xbf16>
      %85 = arith.truncf %75 : vector<8x32xf32> to vector<8x32xbf16>
      %cst_52 = arith.constant dense<0.000000e+00> : vector<8x128xf32>
      %86 = tpu.matmul %85, %13, %cst_52 {dimension_numbers = #tpu.dot_dimension_numbers<[1], [0], [0], [1], [0, 0, 1, 1], [], []>} : vector<8x32xbf16>, vector<32x128xbf16>, vector<8x128xf32> -> vector<8x128xf32>
      %87 = arith.extf %84 : vector<8x128xbf16> to vector<8x128xf32>
      %88 = arith.addf %87, %86 : vector<8x128xf32>
      %89 = vector.broadcast %22 : vector<1x128xf32> to vector<8x128xf32>
      %90 = arith.mulf %88, %89 : vector<8x128xf32>
      %91 = math.tanh %90 : vector<8x128xf32>
      %92 = vector.broadcast %22 : vector<1x128xf32> to vector<8x128xf32>
      %93 = arith.mulf %91, %92 : vector<8x128xf32>
      %94 = vector.broadcast %25 : vector<1x128xf32> to vector<8x128xf32>
      %95 = arith.addf %93, %94 : vector<8x128xf32>
      %96 = vector.extract_strided_slice %95 {offsets = [0, 0], sizes = [8, 32], strides = [1, 1]} : vector<8x128xf32> to vector<8x32xf32>
      %97 = vector.extract_strided_slice %95 {offsets = [0, 32], sizes = [8, 32], strides = [1, 1]} : vector<8x128xf32> to vector<8x32xf32>
      %98 = vector.extract_strided_slice %95 {offsets = [0, 64], sizes = [8, 32], strides = [1, 1]} : vector<8x128xf32> to vector<8x32xf32>
      %99 = vector.extract_strided_slice %95 {offsets = [0, 96], sizes = [8, 32], strides = [1, 1]} : vector<8x128xf32> to vector<8x32xf32>
      %100 = arith.mulf %97, %73 : vector<8x32xf32>
      %101 = arith.mulf %96, %98 : vector<8x32xf32>
      %102 = arith.addf %100, %101 : vector<8x32xf32>
      %103 = math.tanh %102 : vector<8x32xf32>
      %104 = arith.mulf %99, %103 : vector<8x32xf32>
      %105 = arith.truncf %104 : vector<8x32xf32> to vector<8x32xbf16>
      %106 = arith.index_cast %81 : i32 to index
      %c0_53 = arith.constant 0 : index
      %c0_54 = arith.constant 0 : index
      %107 = vector.load %arg10[%106, %c0_53, %c0_54] : memref<8x8x32xbf16, #tpu.memory_space<vmem>>, vector<1x8x32xbf16>
      %108 = vector.shape_cast %107 : vector<1x8x32xbf16> to vector<8x32xbf16>
      %109 = vector.shape_cast %105 : vector<8x32xbf16> to vector<1x8x32xbf16>
      tpu.vector_store %arg10[%106, %c0_53, %c0_54], %109 {strides = array<i32>} : memref<8x8x32xbf16, #tpu.memory_space<vmem>>, vector<1x8x32xbf16>,
      %c2_i32_55 = arith.constant 2 : i32
      %110 = arith.addi %51, %c2_i32_55 : i32
      %111 = arith.index_cast %110 : i32 to index
      %c0_56 = arith.constant 0 : index
      %c0_57 = arith.constant 0 : index
      %112 = vector.load %arg9[%111, %c0_56, %c0_57] : memref<8x8x128xbf16, #tpu.memory_space<vmem>>, vector<1x8x128xbf16>
      %113 = vector.shape_cast %112 : vector<1x8x128xbf16> to vector<8x128xbf16>
      %114 = arith.truncf %104 : vector<8x32xf32> to vector<8x32xbf16>
      %cst_58 = arith.constant dense<0.000000e+00> : vector<8x128xf32>
      %115 = tpu.matmul %114, %13, %cst_58 {dimension_numbers = #tpu.dot_dimension_numbers<[1], [0], [0], [1], [0, 0, 1, 1], [], []>} : vector<8x32xbf16>, vector<32x128xbf16>, vector<8x128xf32> -> vector<8x128xf32>
      %116 = arith.extf %113 : vector<8x128xbf16> to vector<8x128xf32>
      %117 = arith.addf %116, %115 : vector<8x128xf32>
      %118 = vector.broadcast %22 : vector<1x128xf32> to vector<8x128xf32>
      %119 = arith.mulf %117, %118 : vector<8x128xf32>
      %120 = math.tanh %119 : vector<8x128xf32>
      %121 = vector.broadcast %22 : vector<1x128xf32> to vector<8x128xf32>
      %122 = arith.mulf %120, %121 : vector<8x128xf32>
      %123 = vector.broadcast %25 : vector<1x128xf32> to vector<8x128xf32>
      %124 = arith.addf %122, %123 : vector<8x128xf32>
      %125 = vector.extract_strided_slice %124 {offsets = [0, 0], sizes = [8, 32], strides = [1, 1]} : vector<8x128xf32> to vector<8x32xf32>
      %126 = vector.extract_strided_slice %124 {offsets = [0, 32], sizes = [8, 32], strides = [1, 1]} : vector<8x128xf32> to vector<8x32xf32>
      %127 = vector.extract_strided_slice %124 {offsets = [0, 64], sizes = [8, 32], strides = [1, 1]} : vector<8x128xf32> to vector<8x32xf32>
      %128 = vector.extract_strided_slice %124 {offsets = [0, 96], sizes = [8, 32], strides = [1, 1]} : vector<8x128xf32> to vector<8x32xf32>
      %129 = arith.mulf %126, %102 : vector<8x32xf32>
      %130 = arith.mulf %125, %127 : vector<8x32xf32>
      %131 = arith.addf %129, %130 : vector<8x32xf32>
      %132 = math.tanh %131 : vector<8x32xf32>
      %133 = arith.mulf %128, %132 : vector<8x32xf32>
      %134 = arith.truncf %133 : vector<8x32xf32> to vector<8x32xbf16>
      %135 = arith.index_cast %110 : i32 to index
      %c0_59 = arith.constant 0 : index
      %c0_60 = arith.constant 0 : index
      %136 = vector.load %arg10[%135, %c0_59, %c0_60] : memref<8x8x32xbf16, #tpu.memory_space<vmem>>, vector<1x8x32xbf16>
      %137 = vector.shape_cast %136 : vector<1x8x32xbf16> to vector<8x32xbf16>
      %138 = vector.shape_cast %134 : vector<8x32xbf16> to vector<1x8x32xbf16>
      tpu.vector_store %arg10[%135, %c0_59, %c0_60], %138 {strides = array<i32>} : memref<8x8x32xbf16, #tpu.memory_space<vmem>>, vector<1x8x32xbf16>,
      %c3_i32 = arith.constant 3 : i32
      %139 = arith.addi %51, %c3_i32 : i32
      %140 = arith.index_cast %139 : i32 to index
      %c0_61 = arith.constant 0 : index
      %c0_62 = arith.constant 0 : index
      %141 = vector.load %arg9[%140, %c0_61, %c0_62] : memref<8x8x128xbf16, #tpu.memory_space<vmem>>, vector<1x8x128xbf16>
      %142 = vector.shape_cast %141 : vector<1x8x128xbf16> to vector<8x128xbf16>
      %143 = arith.truncf %133 : vector<8x32xf32> to vector<8x32xbf16>
      %cst_63 = arith.constant dense<0.000000e+00> : vector<8x128xf32>
      %144 = tpu.matmul %143, %13, %cst_63 {dimension_numbers = #tpu.dot_dimension_numbers<[1], [0], [0], [1], [0, 0, 1, 1], [], []>} : vector<8x32xbf16>, vector<32x128xbf16>, vector<8x128xf32> -> vector<8x128xf32>
      %145 = arith.extf %142 : vector<8x128xbf16> to vector<8x128xf32>
      %146 = arith.addf %145, %144 : vector<8x128xf32>
      %147 = vector.broadcast %22 : vector<1x128xf32> to vector<8x128xf32>
      %148 = arith.mulf %146, %147 : vector<8x128xf32>
      %149 = math.tanh %148 : vector<8x128xf32>
      %150 = vector.broadcast %22 : vector<1x128xf32> to vector<8x128xf32>
      %151 = arith.mulf %149, %150 : vector<8x128xf32>
      %152 = vector.broadcast %25 : vector<1x128xf32> to vector<8x128xf32>
      %153 = arith.addf %151, %152 : vector<8x128xf32>
      %154 = vector.extract_strided_slice %153 {offsets = [0, 0], sizes = [8, 32], strides = [1, 1]} : vector<8x128xf32> to vector<8x32xf32>
      %155 = vector.extract_strided_slice %153 {offsets = [0, 32], sizes = [8, 32], strides = [1, 1]} : vector<8x128xf32> to vector<8x32xf32>
      %156 = vector.extract_strided_slice %153 {offsets = [0, 64], sizes = [8, 32], strides = [1, 1]} : vector<8x128xf32> to vector<8x32xf32>
      %157 = vector.extract_strided_slice %153 {offsets = [0, 96], sizes = [8, 32], strides = [1, 1]} : vector<8x128xf32> to vector<8x32xf32>
      %158 = arith.mulf %155, %131 : vector<8x32xf32>
      %159 = arith.mulf %154, %156 : vector<8x32xf32>
      %160 = arith.addf %158, %159 : vector<8x32xf32>
      %161 = math.tanh %160 : vector<8x32xf32>
      %162 = arith.mulf %157, %161 : vector<8x32xf32>
      %163 = arith.truncf %162 : vector<8x32xf32> to vector<8x32xbf16>
      %164 = arith.index_cast %139 : i32 to index
      %c0_64 = arith.constant 0 : index
      %c0_65 = arith.constant 0 : index
      %165 = vector.load %arg10[%164, %c0_64, %c0_65] : memref<8x8x32xbf16, #tpu.memory_space<vmem>>, vector<1x8x32xbf16>
      %166 = vector.shape_cast %165 : vector<1x8x32xbf16> to vector<8x32xbf16>
      %167 = vector.shape_cast %163 : vector<8x32xbf16> to vector<1x8x32xbf16>
      tpu.vector_store %arg10[%164, %c0_64, %c0_65], %167 {strides = array<i32>} : memref<8x8x32xbf16, #tpu.memory_space<vmem>>, vector<1x8x32xbf16>,
      scf.yield %162, %160 : vector<8x32xf32>, vector<8x32xf32>
    }
    %c2_i32_21 = arith.constant 2 : i32
    %c8_i32 = arith.constant 8 : i32
    %c0_i32_22 = arith.constant 0 : i32
    %30 = arith.addi %c8_i32, %c0_i32_22 : i32
    %c1_i32_23 = arith.constant 1 : i32
    %31:2 = scf.for %arg13 = %c8_i32 to %30 step %c1_i32_23 iter_args(%arg14 = %29#0, %arg15 = %29#1) -> (vector<8x32xf32>, vector<8x32xf32>)  : i32 {
      %51 = arith.index_cast %arg13 : i32 to index
      %c0_43 = arith.constant 0 : index
      %c0_44 = arith.constant 0 : index
      %52 = vector.load %arg9[%51, %c0_43, %c0_44] : memref<8x8x128xbf16, #tpu.memory_space<vmem>>, vector<1x8x128xbf16>
      %53 = vector.shape_cast %52 : vector<1x8x128xbf16> to vector<8x128xbf16>
      %54 = arith.truncf %arg14 : vector<8x32xf32> to vector<8x32xbf16>
      %cst_45 = arith.constant dense<0.000000e+00> : vector<8x128xf32>
      %55 = tpu.matmul %54, %13, %cst_45 {dimension_numbers = #tpu.dot_dimension_numbers<[1], [0], [0], [1], [0, 0, 1, 1], [], []>} : vector<8x32xbf16>, vector<32x128xbf16>, vector<8x128xf32> -> vector<8x128xf32>
      %56 = arith.extf %53 : vector<8x128xbf16> to vector<8x128xf32>
      %57 = arith.addf %56, %55 : vector<8x128xf32>
      %58 = vector.broadcast %22 : vector<1x128xf32> to vector<8x128xf32>
      %59 = arith.mulf %57, %58 : vector<8x128xf32>
      %60 = math.tanh %59 : vector<8x128xf32>
      %61 = vector.broadcast %22 : vector<1x128xf32> to vector<8x128xf32>
      %62 = arith.mulf %60, %61 : vector<8x128xf32>
      %63 = vector.broadcast %25 : vector<1x128xf32> to vector<8x128xf32>
      %64 = arith.addf %62, %63 : vector<8x128xf32>
      %65 = vector.extract_strided_slice %64 {offsets = [0, 0], sizes = [8, 32], strides = [1, 1]} : vector<8x128xf32> to vector<8x32xf32>
      %66 = vector.extract_strided_slice %64 {offsets = [0, 32], sizes = [8, 32], strides = [1, 1]} : vector<8x128xf32> to vector<8x32xf32>
      %67 = vector.extract_strided_slice %64 {offsets = [0, 64], sizes = [8, 32], strides = [1, 1]} : vector<8x128xf32> to vector<8x32xf32>
      %68 = vector.extract_strided_slice %64 {offsets = [0, 96], sizes = [8, 32], strides = [1, 1]} : vector<8x128xf32> to vector<8x32xf32>
      %69 = arith.mulf %66, %arg15 : vector<8x32xf32>
      %70 = arith.mulf %65, %67 : vector<8x32xf32>
      %71 = arith.addf %69, %70 : vector<8x32xf32>
      %72 = math.tanh %71 : vector<8x32xf32>
      %73 = arith.mulf %68, %72 : vector<8x32xf32>
      %74 = arith.truncf %73 : vector<8x32xf32> to vector<8x32xbf16>
      %75 = arith.index_cast %arg13 : i32 to index
      %c0_46 = arith.constant 0 : index
      %c0_47 = arith.constant 0 : index
      %76 = vector.load %arg10[%75, %c0_46, %c0_47] : memref<8x8x32xbf16, #tpu.memory_space<vmem>>, vector<1x8x32xbf16>
      %77 = vector.shape_cast %76 : vector<1x8x32xbf16> to vector<8x32xbf16>
      %78 = vector.shape_cast %74 : vector<8x32xbf16> to vector<1x8x32xbf16>
      tpu.vector_store %arg10[%75, %c0_46, %c0_47], %78 {strides = array<i32>} : memref<8x8x32xbf16, #tpu.memory_space<vmem>>, vector<1x8x32xbf16>,
      scf.yield %73, %71 : vector<8x32xf32>, vector<8x32xf32>
    }
    %c0_i32_24 = arith.constant 0 : i32
    %c0_25 = arith.constant 0 : index
    %c0_26 = arith.constant 0 : index
    %32 = vector.load %arg11[%c0_25, %c0_26] : memref<8x32xf32, #tpu.memory_space<vmem>>, vector<8x32xf32>
    tpu.vector_store %arg11[%c0_25, %c0_26], %31#0 {strides = array<i32>} : memref<8x32xf32, #tpu.memory_space<vmem>>, vector<8x32xf32>,
    %c0_27 = arith.constant 0 : index
    %c0_28 = arith.constant 0 : index
    %33 = vector.load %arg12[%c0_27, %c0_28] : memref<8x32xf32, #tpu.memory_space<vmem>>, vector<8x32xf32>
    tpu.vector_store %arg12[%c0_27, %c0_28], %31#1 {strides = array<i32>} : memref<8x32xf32, #tpu.memory_space<vmem>>, vector<8x32xf32>,
    %c0_29 = arith.constant 0 : index
    %c0_30 = arith.constant 0 : index
    %c0_31 = arith.constant 0 : index
    %34 = vector.load %arg10[%c0_29, %c0_30, %c0_31] : memref<8x8x32xbf16, #tpu.memory_space<vmem>>, vector<8x8x32xbf16>
    %35 = vector.shape_cast %34 : vector<8x8x32xbf16> to vector<64x32xbf16>
    %c0_32 = arith.constant 0 : index
    %c0_33 = arith.constant 0 : index
    %36 = vector.load %arg6[%c0_32, %c0_33] : memref<32x128xbf16, #tpu.memory_space<vmem>>, vector<32x128xbf16>
    %cst_34 = arith.constant dense<0.000000e+00> : vector<64x128xf32>
    %37 = tpu.matmul %35, %36, %cst_34 {dimension_numbers = #tpu.dot_dimension_numbers<[1], [0], [0], [1], [0, 0, 1, 1], [], []>} : vector<64x32xbf16>, vector<32x128xbf16>, vector<64x128xf32> -> vector<64x128xf32>
    %c0_35 = arith.constant 0 : index
    %c0_36 = arith.constant 0 : index
    %38 = vector.load %arg7[%c0_35, %c0_36] : memref<1x128xf32, #tpu.memory_space<vmem>>, vector<1x128xf32>
    %39 = vector.broadcast %38 : vector<1x128xf32> to vector<64x128xf32>
    %40 = arith.addf %37, %39 : vector<64x128xf32>
    %cst_37 = arith.constant 5.000000e-01 : f32
    %41 = vector.broadcast %cst_37 : f32 to vector<64x128xf32>
    %42 = arith.mulf %41, %40 : vector<64x128xf32>
    %43 = math.tanh %42 : vector<64x128xf32>
    %cst_38 = arith.constant 5.000000e-01 : f32
    %44 = vector.broadcast %cst_38 : f32 to vector<64x128xf32>
    %45 = arith.mulf %44, %43 : vector<64x128xf32>
    %cst_39 = arith.constant 5.000000e-01 : f32
    %46 = vector.broadcast %cst_39 : f32 to vector<64x128xf32>
    %47 = arith.addf %45, %46 : vector<64x128xf32>
    %48 = vector.shape_cast %47 : vector<64x128xf32> to vector<8x8x128xf32>
    %49 = arith.truncf %48 : vector<8x8x128xf32> to vector<8x8x128xbf16>
    %c0_40 = arith.constant 0 : index
    %c0_41 = arith.constant 0 : index
    %c0_42 = arith.constant 0 : index
    %50 = vector.load %arg8[%c0_40, %c0_41, %c0_42] : memref<8x8x128xbf16, #tpu.memory_space<vmem>>, vector<8x8x128xbf16>
    tpu.vector_store %arg8[%c0_40, %c0_41, %c0_42], %49 {strides = array<i32>} : memref<8x8x128xbf16, #tpu.memory_space<vmem>>, vector<8x8x128xbf16>,
    return
  }
  func.func @transform_0(%arg0: i32, %arg1: i32) -> (i32, i32, i32) {
    %c0_i32 = arith.constant 0 : i32
    %c0_i32_0 = arith.constant 0 : i32
    return %arg1, %arg0, %c0_i32 : i32, i32, i32
  }
  func.func @transform_1(%arg0: i32, %arg1: i32) -> (i32, i32) {
    %c0_i32 = arith.constant 0 : i32
    %c0_i32_0 = arith.constant 0 : i32
    %c0_i32_1 = arith.constant 0 : i32
    return %c0_i32, %c0_i32_0 : i32, i32
  }
  func.func @transform_2(%arg0: i32, %arg1: i32) -> (i32, i32) {
    %c0_i32 = arith.constant 0 : i32
    %c0_i32_0 = arith.constant 0 : i32
    %c0_i32_1 = arith.constant 0 : i32
    return %c0_i32, %c0_i32_0 : i32, i32
  }
  func.func @transform_3(%arg0: i32, %arg1: i32) -> (i32, i32) {
    %c0_i32 = arith.constant 0 : i32
    %c0_i32_0 = arith.constant 0 : i32
    %c0_i32_1 = arith.constant 0 : i32
    return %c0_i32, %c0_i32_0 : i32, i32
  }
  func.func @transform_4(%arg0: i32, %arg1: i32) -> (i32, i32) {
    %c0_i32 = arith.constant 0 : i32
    %c0_i32_0 = arith.constant 0 : i32
    %c0_i32_1 = arith.constant 0 : i32
    return %c0_i32, %c0_i32_0 : i32, i32
  }
  func.func @transform_5(%arg0: i32, %arg1: i32) -> (i32, i32) {
    %c0_i32 = arith.constant 0 : i32
    %c0_i32_0 = arith.constant 0 : i32
    %c0_i32_1 = arith.constant 0 : i32
    return %c0_i32, %c0_i32_0 : i32, i32
  }
  func.func @transform_6(%arg0: i32, %arg1: i32) -> (i32, i32, i32) {
    %c0_i32 = arith.constant 0 : i32
    %c0_i32_0 = arith.constant 0 : i32
    return %arg1, %arg0, %c0_i32 : i32, i32, i32
  }
}

</mosaic_0001>

<llo_original>
// kernel: dkt_forward.1
$region0: #{dkt_forward.1}
  #allocation0 [shape = 'u32[]', space=smem, size = 0x4, offset = 0x4, fixed_abs, tag = 'smem constant byte address 0x4 - core index']
  #allocation1 [shape = 'u32[144,128]{1,0:T(1,128)}', space=vmem, size = 0x12000, scoped, tag = 'internal scratch']
  #allocation2 [shape = 'bf16[8,8,128]{2,1,0:T(8,128)(2,1)}', space=vmem, size = 0x4000, scoped, tag = 'scratch operand']
  #allocation3 [shape = 'bf16[8,8,32]{2,1,0:T(8,128)(2,1)}', space=vmem, size = 0x4000, scoped, tag = 'scratch operand']
  #allocation4 [shape = 'f32[8,32]{1,0:T(8,128)}', space=vmem, size = 0x1000, scoped, tag = 'scratch operand']
  #allocation5 [shape = 'f32[8,32]{1,0:T(8,128)}', space=vmem, size = 0x1000, scoped, tag = 'scratch operand']
  %s0 = inlined_call_operand.vmem [shape: bf16[8,8,32], index: 0, kind: input, shape index: {}]
  %s1 = inlined_call_operand.vmem [shape: bf16[32,128], index: 1, kind: input, shape index: {}]
  %s2 = inlined_call_operand.vmem [shape: bf16[32,128], index: 2, kind: input, shape index: {}]
  %s3 = inlined_call_operand.vmem [shape: f32[1,128], index: 3, kind: input, shape index: {}]
  %s4 = inlined_call_operand.vmem [shape: bf16[32,128], index: 4, kind: input, shape index: {}]
  %s5 = inlined_call_operand.vmem [shape: f32[1,128], index: 5, kind: input, shape index: {}]
  %s6 = inlined_call_operand.vmem [shape: bf16[8,8,128], index: 6, kind: output, shape index: {}]
  %s7 = sld [smem:[#allocation0]]
  $region45: #{dkt_forward.1} parent=0
    _
  %s9 = ssub.s32 1, %s7
  %s10 = scalar_select 0, %s9, %s7
  // Predicated region
  $region2: #{dkt_forward.1} parent=0 // pred_check
    _
  $region3: #{dkt_forward.1} parent=0 // pred_check_branch
    %12 = sbr.rel (0) target = $region5
  $region4: #{dkt_forward.1} parent=0 // pred_region
    _
  $region5: #{dkt_forward.1} parent=0 // pred_fallthru
    _
  // Predicated region
  $region6: #{dkt_forward.1} parent=0 // pred_check
    _
  $region7: #{dkt_forward.1} parent=0 // pred_check_branch
    %14 = sbr.rel (0) target = $region9
  $region8: #{dkt_forward.1} parent=0 // pred_region
    _
  $region9: #{dkt_forward.1} parent=0 // pred_fallthru
    _
  // Predicated region
  $region10: #{dkt_forward.1} parent=0 // pred_check
    _
  $region11: #{dkt_forward.1} parent=0 // pred_check_branch
    %16 = sbr.rel (0) target = $region13
  $region12: #{dkt_forward.1} parent=0 // pred_region
    _
  $region13: #{dkt_forward.1} parent=0 // pred_fallthru
    _
  // Predicated region
  $region14: #{dkt_forward.1} parent=0 // pred_check
    _
  $region15: #{dkt_forward.1} parent=0 // pred_check_branch
    %18 = sbr.rel (0) target = $region17
  $region16: #{dkt_forward.1} parent=0 // pred_region
    _
  $region17: #{dkt_forward.1} parent=0 // pred_fallthru
    _
  // Predicated region
  $region18: #{dkt_forward.1} parent=0 // pred_check
    _
  $region19: #{dkt_forward.1} parent=0 // pred_check_branch
    %20 = sbr.rel (0) target = $region21
  $region20: #{dkt_forward.1} parent=0 // pred_region
    _
  $region21: #{dkt_forward.1} parent=0 // pred_fallthru
    _
  // Predicated region
  $region22: #{dkt_forward.1} parent=0 // pred_check
    _
  $region23: #{dkt_forward.1} parent=0 // pred_check_branch
    %22 = sbr.rel (0) target = $region25
  $region24: #{dkt_forward.1} parent=0 // pred_region
    _
  $region25: #{dkt_forward.1} parent=0 // pred_fallthru
    _
  %p24 = scmp.eq.s32.totalorder 0, 0
  // Predicated region
  $region26: #{dkt_forward.1} parent=0 // pred_check
    %p25 = pneg %p24
  $region27: #{dkt_forward.1} parent=0 // pred_check_branch
    %27 = sbr.rel (%p25) target = $region29
  $region28: #{dkt_forward.1} parent=0 // pred_region
    %vm28 = vcmask 261120
    %29 = vst.msk [vmem:[#allocation4] sm:$0xff] %vm28, 0.0
    %30 = vst.msk [vmem:[#allocation5] sm:$0xff] %vm28, 0.0
  $region29: #{dkt_forward.1} parent=0 // pred_fallthru
    _
  %v31 = vld [vmem:[%s0] sm:$0xf]
  %v32 = vld [vmem:[%s0 + $0x4] sm:$0xf]
  %v33 = vld [vmem:[%s0 + $0x8] sm:$0xf]
  %v34 = vld [vmem:[%s0 + $0xc] sm:$0xf]
  %v35 = vld [vmem:[%s0 + $0x10] sm:$0xf]
  %v36 = vld [vmem:[%s0 + $0x14] sm:$0xf]
  %v37 = vld [vmem:[%s0 + $0x18] sm:$0xf]
  %v38 = vld [vmem:[%s0 + $0x1c] sm:$0xf]
  %v39 = vld [vmem:[%s1] sm:$0xf]
  %v40 = vld [vmem:[%s1 + $0x4] sm:$0xf]
  %v41 = vld [vmem:[%s1 + $0x8] sm:$0xf]
  %v42 = vld [vmem:[%s1 + $0xc] sm:$0xf]
  %v43 = vld [vmem:[%s3] sm:$0x1]
  %v45 = vlaneseq
  %v46 = vshrl.u32 %v45, 7
  %v47 = vsub.s32 0, %v46
  %v48 = vrot.slane %v43, %v47
  %v58 = vunpack.c.l.b16 %v31
  %v59 = vunpack.c.l.b16 %v32
  %v60 = vunpack.c.l.b16 %v33
  %v61 = vunpack.c.l.b16 %v34
  %v62 = vunpack.c.l.b16 %v35
  %v63 = vunpack.c.l.b16 %v36
  %v64 = vunpack.c.l.b16 %v37
  %v65 = vunpack.c.l.b16 %v38
  %v66 = vpack.c.b16 %v59, %v58
  %v67 = vpack.c.b16 %v61, %v60
  %v68 = vpack.c.b16 %v63, %v62
  %v69 = vpack.c.b16 %v65, %v64
  %v74 = vunpack.c.l.b16 %v39
  %v75 = vunpack.c.l.b16 %v40
  %v76 = vunpack.c.l.b16 %v41
  %v77 = vunpack.c.l.b16 %v42
  %v78 = vpack.c.b16 %v75, %v74
  %v79 = vpack.c.b16 %v77, %v76
  %vm82 = vcmask 261120
  %v84 = vsel %vm82, %v66, 0
  %v87 = vsel %vm82, %v67, 0
  %v90 = vsel %vm82, %v68, 0
  %v93 = vsel %vm82, %v69, 0
  %95 = vmatprep.subr.bf16.mxu0 0
  %96 = vmatpush1.bf16.msra.mxu0 %v78
  %97 = vmatprep.subr.bf16.mxu0 0
  %98 = vmatpush1.bf16.msra.mxu0 %v79
  %99 = vmatprep.subr.bf16.mxu0 0
  %100 = vmatpush1.bf16.msra.mxu0 0
  %101 = vmatprep.subr.bf16.mxu0 0
  %102 = vmatpush1.bf16.msra.mxu0 0
  %103 = vmatprep.subr.bf16.mxu0 0
  %104 = vmatpush1.bf16.msra.mxu0 0
  %105 = vmatprep.subr.bf16.mxu0 0
  %106 = vmatpush1.bf16.msra.mxu0 0
  %107 = vmatprep.subr.bf16.mxu0 0
  %108 = vmatpush1.bf16.msra.mxu0 0
  %109 = vmatprep.subr.bf16.mxu0 0
  %110 = vmatpush1.bf16.msra.mxu0 0
  %111 = vmatprep.subr.bf16.mxu0 0
  %112 = vmatpush1.bf16.msra.mxu0 0
  %113 = vmatprep.subr.bf16.mxu0 0
  %114 = vmatpush1.bf16.msra.mxu0 0
  %115 = vmatprep.subr.bf16.mxu0 0
  %116 = vmatpush1.bf16.msra.mxu0 0
  %117 = vmatprep.subr.bf16.mxu0 0
  %118 = vmatpush1.bf16.msra.mxu0 0
  %119 = vmatprep.subr.bf16.mxu0 0
  %120 = vmatpush1.bf16.msra.mxu0 0
  %121 = vmatprep.subr.bf16.mxu0 0
  %122 = vmatpush1.bf16.msra.mxu0 0
  %123 = vmatprep.subr.bf16.mxu0 0
  %124 = vmatpush1.bf16.msra.mxu0 0
  %125 = vmatprep.subr.bf16.mxu0 0
  %126 = vmatpush1.bf16.msra.mxu0 0
  %127 = vmatprep.mubr.bf16.mxu0 0
  %128 = vmatmul.mubr.bf16.gmra.mrb[0].mxu0 %v84
  %v129 = vpop.f32.mrb[0].mxu0
  %v130 = vadd.f32 %v48, %v129
  %v131 = vpop.f32.mrb[0].mxu0
  %v132 = vpop.f32.mrb[0].mxu0
  %v133 = vadd.f32 %v48, %v132
  %v134 = vpop.f32.mrb[0].mxu0
  %135 = vmatprep.mubr.bf16.mxu0 0
  %136 = vmatmul.mubr.bf16.gmra.mrb[0].mxu0 %v87
  %v137 = vpop.f32.mrb[0].mxu0
  %v138 = vadd.f32 %v48, %v137
  %v139 = vpop.f32.mrb[0].mxu0
  %v140 = vpop.f32.mrb[0].mxu0
  %v141 = vadd.f32 %v48, %v140
  %v142 = vpop.f32.mrb[0].mxu0
  %143 = vmatprep.mubr.bf16.mxu0 0
  %144 = vmatmul.mubr.bf16.gmra.mrb[0].mxu0 %v90
  %v145 = vpop.f32.mrb[0].mxu0
  %v146 = vadd.f32 %v48, %v145
  %v147 = vpop.f32.mrb[0].mxu0
  %v148 = vpop.f32.mrb[0].mxu0
  %v149 = vadd.f32 %v48, %v148
  %v150 = vpop.f32.mrb[0].mxu0
  %151 = vmatprep.mubr.bf16.mxu0 0
  %152 = vmatmul.mubr.bf16.gmra.mrb[0].mxu0 %v93
  %v153 = vpop.f32.mrb[0].mxu0
  %v154 = vadd.f32 %v48, %v153
  %v155 = vpop.f32.mrb[0].mxu0
  %v156 = vpop.f32.mrb[0].mxu0
  %v157 = vadd.f32 %v48, %v156
  %v158 = vpop.f32.mrb[0].mxu0
  %159 = vdwg.mxu0
  %v160 = vpack.c.bf16 %v130, %v130
  %v161 = vpack.c.bf16 %v133, %v133
  %v162 = vpack.c.bf16 %v138, %v138
  %v163 = vpack.c.bf16 %v141, %v141
  %v164 = vpack.c.bf16 %v146, %v146
  %v165 = vpack.c.bf16 %v149, %v149
  %v166 = vpack.c.bf16 %v154, %v154
  %v167 = vpack.c.bf16 %v157, %v157
  %168 = vst [vmem:[#allocation2] sm:$0xf] %v160
  %169 = vst [vmem:[#allocation2 + $0x4] sm:$0xf] %v161
  %170 = vst [vmem:[#allocation2 + $0x8] sm:$0xf] %v162
  %171 = vst [vmem:[#allocation2 + $0xc] sm:$0xf] %v163
  %172 = vst [vmem:[#allocation2 + $0x10] sm:$0xf] %v164
  %173 = vst [vmem:[#allocation2 + $0x14] sm:$0xf] %v165
  %174 = vst [vmem:[#allocation2 + $0x18] sm:$0xf] %v166
  %175 = vst [vmem:[#allocation2 + $0x1c] sm:$0xf] %v167
  %v176 = vld [vmem:[%s2] sm:$0xf]
  %v177 = vld [vmem:[%s2 + $0x4] sm:$0xf]
  %v178 = vld [vmem:[%s2 + $0x8] sm:$0xf]
  %v179 = vld [vmem:[%s2 + $0xc] sm:$0xf]
  %v180 = vlaneseq
  %v181 = vand.u32 %v180, 127
  %vm182 = vcmp.ge.s32.totalorder %v181, 64
  %vm183 = vcmp.lt.s32.totalorder %v181, 96
  %vm184 = vmand %vm182, %vm183
  %v185 = vsel %vm184, 1.0, 0.5
  %v186 = vsel %vm184, 0.0, 0.5
  %v187 = vld [vmem:[#allocation4] sm:$0xff]
  %v188 = vld [vmem:[#allocation5] sm:$0xff]
  loop: start=0, step=1, limit=2
  $region30: #{dkt_forward.1} parent=0 // loop_pre_header
    _
  $region31: #{dkt_forward.1} parent=0 // loop_header
    %s190 = sphi 0, %s194
    %p191 = scmp.ge.s32.totalorder %s190, 2
    %v195 = vphi %v187, %v543
    %v196 = vphi %v188, %v547
  $region32: #{dkt_forward.1} parent=0 // loop_header_branch
    %193 = sbr.rel (%p191) target = $region36
  $region33: #{dkt_forward.1} parent=0 // loop_body
    %s197 = smul.u32 %s190, 4
    %s198 = smul.addr %s197, 4
    %s199 = scalar_lea.vmem [#allocation2], %s198
    %v200 = vld [vmem:[%s199] sm:$0xf]
    %v201 = vpack.c.bf16 %v195, %v195
    %v206 = vunpack.c.l.b16 %v176
    %v207 = vunpack.c.l.b16 %v177
    %v208 = vunpack.c.l.b16 %v178
    %v209 = vunpack.c.l.b16 %v179
    %v210 = vpack.c.b16 %v207, %v206
    %v211 = vpack.c.b16 %v209, %v208
    %v215 = vsel %vm82, %v201, 0
    %217 = vmatprep.subr.bf16.mxu0 0
    %218 = vmatpush1.bf16.msra.mxu0 %v210
    %219 = vmatprep.subr.bf16.mxu0 0
    %220 = vmatpush1.bf16.msra.mxu0 %v211
    %221 = vmatprep.subr.bf16.mxu0 0
    %222 = vmatpush1.bf16.msra.mxu0 0
    %223 = vmatprep.subr.bf16.mxu0 0
    %224 = vmatpush1.bf16.msra.mxu0 0
    %225 = vmatprep.subr.bf16.mxu0 0
    %226 = vmatpush1.bf16.msra.mxu0 0
    %227 = vmatprep.subr.bf16.mxu0 0
    %228 = vmatpush1.bf16.msra.mxu0 0
    %229 = vmatprep.subr.bf16.mxu0 0
    %230 = vmatpush1.bf16.msra.mxu0 0
    %231 = vmatprep.subr.bf16.mxu0 0
    %232 = vmatpush1.bf16.msra.mxu0 0
    %233 = vmatprep.subr.bf16.mxu0 0
    %234 = vmatpush1.bf16.msra.mxu0 0
    %235 = vmatprep.subr.bf16.mxu0 0
    %236 = vmatpush1.bf16.msra.mxu0 0
    %237 = vmatprep.subr.bf16.mxu0 0
    %238 = vmatpush1.bf16.msra.mxu0 0
    %239 = vmatprep.subr.bf16.mxu0 0
    %240 = vmatpush1.bf16.msra.mxu0 0
    %241 = vmatprep.subr.bf16.mxu0 0
    %242 = vmatpush1.bf16.msra.mxu0 0
    %243 = vmatprep.subr.bf16.mxu0 0
    %244 = vmatpush1.bf16.msra.mxu0 0
    %245 = vmatprep.subr.bf16.mxu0 0
    %246 = vmatpush1.bf16.msra.mxu0 0
    %247 = vmatprep.subr.bf16.mxu0 0
    %248 = vmatpush1.bf16.msra.mxu0 0
    %249 = vmatprep.mubr.bf16.mxu0 0
    %250 = vmatmul.mubr.bf16.gmra.mrb[0].mxu0 %v215
    %v251 = vpop.f32.mrb[0].mxu0
    %v252 = vadd.f32 0.0, %v251
    %v253 = vpop.f32.mrb[0].mxu0
    %v254 = vpop.f32.mrb[0].mxu0
    %v255 = vpop.f32.mrb[0].mxu0
    %256 = vdwg.mxu0
    %v257 = vunpack.c.l.bf16 %v200
    %v258 = vadd.f32 %v257, %v252
    %v259 = vmul.f32 %v258, %v185
    %v260 = vtanh.pop %v259
    %v261 = vmul.f32 %v260, %v185
    %v262 = vadd.f32 %v261, %v186
    %264 = vrot.lane.b32.xlu0 %v196, 32
    %v265 = vpop.permute.xlu0 %264
    %v267 = vmul.f32 %v262, %v265
    %269 = vrot.lane.b32.xlu0 %v262, 64
    %v270 = vpop.permute.xlu0 %269
    %v272 = vmul.f32 %v262, %v270
    %274 = vrot.lane.b32.xlu0 %v272, 32
    %v275 = vpop.permute.xlu0 %274
    %v277 = vadd.f32 %v267, %v275
    %v278 = vtanh.pop %v277
    %280 = vrot.lane.b32.xlu0 %v278, 64
    %v281 = vpop.permute.xlu0 %280
    %v283 = vmul.f32 %v262, %v281
    %v284 = vpack.c.bf16 %v283, %v283
    %v286 = vunpack.c.l.b16 %v284
    %v287 = vpack.c.b16 %v286, %v286
    %288 = vrot.lane.b32.xlu0 %v287, 32
    %v289 = vpop.permute.xlu0 %288
    %s291 = smul.addr %s197, 4
    %s292 = scalar_lea.vmem [#allocation3], %s291
    %vm293 = vcmask 257024
    %294 = vst.msk [vmem:[%s292] sm:$0xf] %vm293, %v289
    %s295 = sadd.s32 %s197, 1
    %s296 = smul.addr %s295, 4
    %s297 = scalar_lea.vmem [#allocation2], %s296
    %v298 = vld [vmem:[%s297] sm:$0xf]
    %299 = vrot.lane.b32.xlu0 %v284, 32
    %v300 = vpop.permute.xlu0 %299
    %v302 = vsel %vm82, %v300, 0
    %304 = vmatprep.subr.bf16.mxu0 0
    %305 = vmatpush1.bf16.msra.mxu0 %v210
    %306 = vmatprep.subr.bf16.mxu0 0
    %307 = vmatpush1.bf16.msra.mxu0 %v211
    %308 = vmatprep.subr.bf16.mxu0 0
    %309 = vmatpush1.bf16.msra.mxu0 0
    %310 = vmatprep.subr.bf16.mxu0 0
    %311 = vmatpush1.bf16.msra.mxu0 0
    %312 = vmatprep.subr.bf16.mxu0 0
    %313 = vmatpush1.bf16.msra.mxu0 0
    %314 = vmatprep.subr.bf16.mxu0 0
    %315 = vmatpush1.bf16.msra.mxu0 0
    %316 = vmatprep.subr.bf16.mxu0 0
    %317 = vmatpush1.bf16.msra.mxu0 0
    %318 = vmatprep.subr.bf16.mxu0 0
    %319 = vmatpush1.bf16.msra.mxu0 0
    %320 = vmatprep.subr.bf16.mxu0 0
    %321 = vmatpush1.bf16.msra.mxu0 0
    %322 = vmatprep.subr.bf16.mxu0 0
    %323 = vmatpush1.bf16.msra.mxu0 0
    %324 = vmatprep.subr.bf16.mxu0 0
    %325 = vmatpush1.bf16.msra.mxu0 0
    %326 = vmatprep.subr.bf16.mxu0 0
    %327 = vmatpush1.bf16.msra.mxu0 0
    %328 = vmatprep.subr.bf16.mxu0 0
    %329 = vmatpush1.bf16.msra.mxu0 0
    %330 = vmatprep.subr.bf16.mxu0 0
    %331 = vmatpush1.bf16.msra.mxu0 0
    %332 = vmatprep.subr.bf16.mxu0 0
    %333 = vmatpush1.bf16.msra.mxu0 0
    %334 = vmatprep.subr.bf16.mxu0 0
    %335 = vmatpush1.bf16.msra.mxu0 0
    %336 = vmatprep.mubr.bf16.mxu0 0
    %337 = vmatmul.mubr.bf16.gmra.mrb[0].mxu0 %v302
    %v338 = vpop.f32.mrb[0].mxu0
    %v339 = vadd.f32 0.0, %v338
    %v340 = vpop.f32.mrb[0].mxu0
    %v341 = vpop.f32.mrb[0].mxu0
    %v342 = vpop.f32.mrb[0].mxu0
    %343 = vdwg.mxu0
    %v344 = vunpack.c.l.bf16 %v298
    %v345 = vadd.f32 %v344, %v339
    %v346 = vmul.f32 %v345, %v185
    %v347 = vtanh.pop %v346
    %v348 = vmul.f32 %v347, %v185
    %v349 = vadd.f32 %v348, %v186
    %v350 = vmul.f32 %v349, %v277
    %352 = vrot.lane.b32.xlu0 %v349, 64
    %v353 = vpop.permute.xlu0 %352
    %v355 = vmul.f32 %v349, %v353
    %357 = vrot.lane.b32.xlu0 %v355, 32
    %v358 = vpop.permute.xlu0 %357
    %v360 = vadd.f32 %v350, %v358
    %v361 = vtanh.pop %v360
    %363 = vrot.lane.b32.xlu0 %v361, 64
    %v364 = vpop.permute.xlu0 %363
    %v366 = vmul.f32 %v349, %v364
    %v367 = vpack.c.bf16 %v366, %v366
    %v369 = vunpack.c.l.b16 %v367
    %v370 = vpack.c.b16 %v369, %v369
    %371 = vrot.lane.b32.xlu0 %v370, 32
    %v372 = vpop.permute.xlu0 %371
    %s374 = smul.addr %s295, 4
    %s375 = scalar_lea.vmem [#allocation3], %s374
    %376 = vst.msk [vmem:[%s375] sm:$0xf] %vm293, %v372
    %s377 = sadd.s32 %s197, 2
    %s378 = smul.addr %s377, 4
    %s379 = scalar_lea.vmem [#allocation2], %s378
    %v380 = vld [vmem:[%s379] sm:$0xf]
    %381 = vrot.lane.b32.xlu0 %v367, 32
    %v382 = vpop.permute.xlu0 %381
    %v384 = vsel %vm82, %v382, 0
    %386 = vmatprep.subr.bf16.mxu0 0
    %387 = vmatpush1.bf16.msra.mxu0 %v210
    %388 = vmatprep.subr.bf16.mxu0 0
    %389 = vmatpush1.bf16.msra.mxu0 %v211
    %390 = vmatprep.subr.bf16.mxu0 0
    %391 = vmatpush1.bf16.msra.mxu0 0
    %392 = vmatprep.subr.bf16.mxu0 0
    %393 = vmatpush1.bf16.msra.mxu0 0
    %394 = vmatprep.subr.bf16.mxu0 0
    %395 = vmatpush1.bf16.msra.mxu0 0
    %396 = vmatprep.subr.bf16.mxu0 0
    %397 = vmatpush1.bf16.msra.mxu0 0
    %398 = vmatprep.subr.bf16.mxu0 0
    %399 = vmatpush1.bf16.msra.mxu0 0
    %400 = vmatprep.subr.bf16.mxu0 0
    %401 = vmatpush1.bf16.msra.mxu0 0
    %402 = vmatprep.subr.bf16.mxu0 0
    %403 = vmatpush1.bf16.msra.mxu0 0
    %404 = vmatprep.subr.bf16.mxu0 0
    %405 = vmatpush1.bf16.msra.mxu0 0
    %406 = vmatprep.subr.bf16.mxu0 0
    %407 = vmatpush1.bf16.msra.mxu0 0
    %408 = vmatprep.subr.bf16.mxu0 0
    %409 = vmatpush1.bf16.msra.mxu0 0
    %410 = vmatprep.subr.bf16.mxu0 0
    %411 = vmatpush1.bf16.msra.mxu0 0
    %412 = vmatprep.subr.bf16.mxu0 0
    %413 = vmatpush1.bf16.msra.mxu0 0
    %414 = vmatprep.subr.bf16.mxu0 0
    %415 = vmatpush1.bf16.msra.mxu0 0
    %416 = vmatprep.subr.bf16.mxu0 0
    %417 = vmatpush1.bf16.msra.mxu0 0
    %418 = vmatprep.mubr.bf16.mxu0 0
    %419 = vmatmul.mubr.bf16.gmra.mrb[0].mxu0 %v384
    %v420 = vpop.f32.mrb[0].mxu0
    %v421 = vadd.f32 0.0, %v420
    %v422 = vpop.f32.mrb[0].mxu0
    %v423 = vpop.f32.mrb[0].mxu0
    %v424 = vpop.f32.mrb[0].mxu0
    %425 = vdwg.mxu0
    %v426 = vunpack.c.l.bf16 %v380
    %v427 = vadd.f32 %v426, %v421
    %v428 = vmul.f32 %v427, %v185
    %v429 = vtanh.pop %v428
    %v430 = vmul.f32 %v429, %v185
    %v431 = vadd.f32 %v430, %v186
    %v432 = vmul.f32 %v431, %v360
    %434 = vrot.lane.b32.xlu0 %v431, 64
    %v435 = vpop.permute.xlu0 %434
    %v437 = vmul.f32 %v431, %v435
    %439 = vrot.lane.b32.xlu0 %v437, 32
    %v440 = vpop.permute.xlu0 %439
    %v442 = vadd.f32 %v432, %v440
    %v443 = vtanh.pop %v442
    %445 = vrot.lane.b32.xlu0 %v443, 64
    %v446 = vpop.permute.xlu0 %445
    %v448 = vmul.f32 %v431, %v446
    %v449 = vpack.c.bf16 %v448, %v448
    %v451 = vunpack.c.l.b16 %v449
    %v452 = vpack.c.b16 %v451, %v451
    %453 = vrot.lane.b32.xlu0 %v452, 32
    %v454 = vpop.permute.xlu0 %453
    %s456 = smul.addr %s377, 4
    %s457 = scalar_lea.vmem [#allocation3], %s456
    %458 = vst.msk [vmem:[%s457] sm:$0xf] %vm293, %v454
    %s459 = sadd.s32 %s197, 3
    %s460 = smul.addr %s459, 4
    %s461 = scalar_lea.vmem [#allocation2], %s460
    %v462 = vld [vmem:[%s461] sm:$0xf]
    %463 = vrot.lane.b32.xlu0 %v449, 32
    %v464 = vpop.permute.xlu0 %463
    %v466 = vsel %vm82, %v464, 0
    %468 = vmatprep.subr.bf16.mxu0 0
    %469 = vmatpush1.bf16.msra.mxu0 %v210
    %470 = vmatprep.subr.bf16.mxu0 0
    %471 = vmatpush1.bf16.msra.mxu0 %v211
    %472 = vmatprep.subr.bf16.mxu0 0
    %473 = vmatpush1.bf16.msra.mxu0 0
    %474 = vmatprep.subr.bf16.mxu0 0
    %475 = vmatpush1.bf16.msra.mxu0 0
    %476 = vmatprep.subr.bf16.mxu0 0
    %477 = vmatpush1.bf16.msra.mxu0 0
    %478 = vmatprep.subr.bf16.mxu0 0
    %479 = vmatpush1.bf16.msra.mxu0 0
    %480 = vmatprep.subr.bf16.mxu0 0
    %481 = vmatpush1.bf16.msra.mxu0 0
    %482 = vmatprep.subr.bf16.mxu0 0
    %483 = vmatpush1.bf16.msra.mxu0 0
    %484 = vmatprep.subr.bf16.mxu0 0
    %485 = vmatpush1.bf16.msra.mxu0 0
    %486 = vmatprep.subr.bf16.mxu0 0
    %487 = vmatpush1.bf16.msra.mxu0 0
    %488 = vmatprep.subr.bf16.mxu0 0
    %489 = vmatpush1.bf16.msra.mxu0 0
    %490 = vmatprep.subr.bf16.mxu0 0
    %491 = vmatpush1.bf16.msra.mxu0 0
    %492 = vmatprep.subr.bf16.mxu0 0
    %493 = vmatpush1.bf16.msra.mxu0 0
    %494 = vmatprep.subr.bf16.mxu0 0
    %495 = vmatpush1.bf16.msra.mxu0 0
    %496 = vmatprep.subr.bf16.mxu0 0
    %497 = vmatpush1.bf16.msra.mxu0 0
    %498 = vmatprep.subr.bf16.mxu0 0
    %499 = vmatpush1.bf16.msra.mxu0 0
    %500 = vmatprep.mubr.bf16.mxu0 0
    %501 = vmatmul.mubr.bf16.gmra.mrb[0].mxu0 %v466
    %v502 = vpop.f32.mrb[0].mxu0
    %v503 = vadd.f32 0.0, %v502
    %v504 = vpop.f32.mrb[0].mxu0
    %v505 = vpop.f32.mrb[0].mxu0
    %v506 = vpop.f32.mrb[0].mxu0
    %507 = vdwg.mxu0
    %v508 = vunpack.c.l.bf16 %v462
    %v509 = vadd.f32 %v508, %v503
    %v510 = vmul.f32 %v509, %v185
    %v511 = vtanh.pop %v510
    %v512 = vmul.f32 %v511, %v185
    %v513 = vadd.f32 %v512, %v186
    %v514 = vmul.f32 %v513, %v442
    %516 = vrot.lane.b32.xlu0 %v513, 64
    %v517 = vpop.permute.xlu0 %516
    %v519 = vmul.f32 %v513, %v517
    %521 = vrot.lane.b32.xlu0 %v519, 32
    %v522 = vpop.permute.xlu0 %521
    %v524 = vadd.f32 %v514, %v522
    %v525 = vtanh.pop %v524
    %527 = vrot.lane.b32.xlu0 %v525, 64
    %v528 = vpop.permute.xlu0 %527
    %v530 = vmul.f32 %v513, %v528
    %v531 = vpack.c.bf16 %v530, %v530
    %v533 = vunpack.c.l.b16 %v531
    %v534 = vpack.c.b16 %v533, %v533
    %535 = vrot.lane.b32.xlu0 %v534, 32
    %v536 = vpop.permute.xlu0 %535
    %s538 = smul.addr %s459, 4
    %s539 = scalar_lea.vmem [#allocation3], %s538
    %540 = vst.msk [vmem:[%s539] sm:$0xf] %vm293, %v536
    %542 = vrot.lane.b32.xlu0 %v530, 32
    %v543 = vpop.permute.xlu0 %542
    %546 = vrot.lane.b32.xlu0 %v524, 96
    %v547 = vpop.permute.xlu0 %546
  $region34: #{dkt_forward.1} parent=0 // loop_footer
    %s194 = sadd.s32 1, %s190
  $region35: #{dkt_forward.1} parent=0 // loop_footer_branch
    %189 = sbr.rel target = $region31
  $region36: #{dkt_forward.1} parent=0 // loop_exit
    _
  %549 = vst.msk [vmem:[#allocation4] sm:$0xff] %vm82, %v195
  %550 = vst.msk [vmem:[#allocation5] sm:$0xff] %vm82, %v196
  %v551 = vld [vmem:[#allocation3] sm:$0xf]
  %v552 = vld [vmem:[#allocation3 + $0x4] sm:$0xf]
  %v553 = vld [vmem:[#allocation3 + $0x8] sm:$0xf]
  %v554 = vld [vmem:[#allocation3 + $0xc] sm:$0xf]
  %v555 = vld [vmem:[#allocation3 + $0x10] sm:$0xf]
  %v556 = vld [vmem:[#allocation3 + $0x14] sm:$0xf]
  %v557 = vld [vmem:[#allocation3 + $0x18] sm:$0xf]
  %v558 = vld [vmem:[#allocation3 + $0x1c] sm:$0xf]
  %v559 = vld [vmem:[%s4] sm:$0xf]
  %v560 = vld [vmem:[%s4 + $0x4] sm:$0xf]
  %v561 = vld [vmem:[%s4 + $0x8] sm:$0xf]
  %v562 = vld [vmem:[%s4 + $0xc] sm:$0xf]
  %v563 = vld [vmem:[%s5] sm:$0x1]
  %v565 = vlaneseq
  %v566 = vshrl.u32 %v565, 7
  %v567 = vsub.s32 0, %v566
  %v568 = vrot.slane %v563, %v567
  %v578 = vunpack.c.l.b16 %v551
  %v579 = vunpack.c.l.b16 %v552
  %v580 = vunpack.c.l.b16 %v553
  %v581 = vunpack.c.l.b16 %v554
  %v582 = vunpack.c.l.b16 %v555
  %v583 = vunpack.c.l.b16 %v556
  %v584 = vunpack.c.l.b16 %v557
  %v585 = vunpack.c.l.b16 %v558
  %v586 = vpack.c.b16 %v579, %v578
  %v587 = vpack.c.b16 %v581, %v580
  %v588 = vpack.c.b16 %v583, %v582
  %v589 = vpack.c.b16 %v585, %v584
  %v594 = vunpack.c.l.b16 %v559
  %v595 = vunpack.c.l.b16 %v560
  %v596 = vunpack.c.l.b16 %v561
  %v597 = vunpack.c.l.b16 %v562
  %v598 = vpack.c.b16 %v595, %v594
  %v599 = vpack.c.b16 %v597, %v596
  %v603 = vsel %vm82, %v586, 0
  %v606 = vsel %vm82, %v587, 0
  %v609 = vsel %vm82, %v588, 0
  %v612 = vsel %vm82, %v589, 0
  %614 = vmatprep.subr.bf16.mxu0 0
  %615 = vmatpush1.bf16.msra.mxu0 %v598
  %616 = vmatprep.subr.bf16.mxu0 0
  %617 = vmatpush1.bf16.msra.mxu0 %v599
  %618 = vmatprep.subr.bf16.mxu0 0
  %619 = vmatpush1.bf16.msra.mxu0 0
  %620 = vmatprep.subr.bf16.mxu0 0
  %621 = vmatpush1.bf16.msra.mxu0 0
  %622 = vmatprep.subr.bf16.mxu0 0
  %623 = vmatpush1.bf16.msra.mxu0 0
  %624 = vmatprep.subr.bf16.mxu0 0
  %625 = vmatpush1.bf16.msra.mxu0 0
  %626 = vmatprep.subr.bf16.mxu0 0
  %627 = vmatpush1.bf16.msra.mxu0 0
  %628 = vmatprep.subr.bf16.mxu0 0
  %629 = vmatpush1.bf16.msra.mxu0 0
  %630 = vmatprep.subr.bf16.mxu0 0
  %631 = vmatpush1.bf16.msra.mxu0 0
  %632 = vmatprep.subr.bf16.mxu0 0
  %633 = vmatpush1.bf16.msra.mxu0 0
  %634 = vmatprep.subr.bf16.mxu0 0
  %635 = vmatpush1.bf16.msra.mxu0 0
  %636 = vmatprep.subr.bf16.mxu0 0
  %637 = vmatpush1.bf16.msra.mxu0 0
  %638 = vmatprep.subr.bf16.mxu0 0
  %639 = vmatpush1.bf16.msra.mxu0 0
  %640 = vmatprep.subr.bf16.mxu0 0
  %641 = vmatpush1.bf16.msra.mxu0 0
  %642 = vmatprep.subr.bf16.mxu0 0
  %643 = vmatpush1.bf16.msra.mxu0 0
  %644 = vmatprep.subr.bf16.mxu0 0
  %645 = vmatpush1.bf16.msra.mxu0 0
  %646 = vmatprep.mubr.bf16.mxu0 0
  %647 = vmatmul.mubr.bf16.gmra.mrb[0].mxu0 %v603
  %v648 = vpop.f32.mrb[0].mxu0
  %v649 = vadd.f32 %v568, %v648
  %v650 = vpop.f32.mrb[0].mxu0
  %v651 = vpop.f32.mrb[0].mxu0
  %v652 = vadd.f32 %v568, %v651
  %v653 = vpop.f32.mrb[0].mxu0
  %654 = vmatprep.mubr.bf16.mxu0 0
  %655 = vmatmul.mubr.bf16.gmra.mrb[0].mxu0 %v606
  %v656 = vpop.f32.mrb[0].mxu0
  %v657 = vadd.f32 %v568, %v656
  %v658 = vpop.f32.mrb[0].mxu0
  %v659 = vpop.f32.mrb[0].mxu0
  %v660 = vadd.f32 %v568, %v659
  %v661 = vpop.f32.mrb[0].mxu0
  %662 = vmatprep.mubr.bf16.mxu0 0
  %663 = vmatmul.mubr.bf16.gmra.mrb[0].mxu0 %v609
  %v664 = vpop.f32.mrb[0].mxu0
  %v665 = vadd.f32 %v568, %v664
  %v666 = vpop.f32.mrb[0].mxu0
  %v667 = vpop.f32.mrb[0].mxu0
  %v668 = vadd.f32 %v568, %v667
  %v669 = vpop.f32.mrb[0].mxu0
  %670 = vmatprep.mubr.bf16.mxu0 0
  %671 = vmatmul.mubr.bf16.gmra.mrb[0].mxu0 %v612
  %v672 = vpop.f32.mrb[0].mxu0
  %v673 = vadd.f32 %v568, %v672
  %v674 = vpop.f32.mrb[0].mxu0
  %v675 = vpop.f32.mrb[0].mxu0
  %v676 = vadd.f32 %v568, %v675
  %v677 = vpop.f32.mrb[0].mxu0
  %678 = vdwg.mxu0
  %v679 = vmul.f32 %v649, 0.5
  %v680 = vmul.f32 %v652, 0.5
  %v681 = vmul.f32 %v657, 0.5
  %v682 = vmul.f32 %v660, 0.5
  %v683 = vmul.f32 %v665, 0.5
  %v684 = vmul.f32 %v668, 0.5
  %v685 = vmul.f32 %v673, 0.5
  %v686 = vmul.f32 %v676, 0.5
  %v687 = vtanh.pop %v679
  %v688 = vtanh.pop %v680
  %v689 = vtanh.pop %v681
  %v690 = vtanh.pop %v682
  %v691 = vtanh.pop %v683
  %v692 = vtanh.pop %v684
  %v693 = vtanh.pop %v685
  %v694 = vtanh.pop %v686
  %v695 = vmul.f32 %v687, 0.5
  %v696 = vmul.f32 %v688, 0.5
  %v697 = vmul.f32 %v689, 0.5
  %v698 = vmul.f32 %v690, 0.5
  %v699 = vmul.f32 %v691, 0.5
  %v700 = vmul.f32 %v692, 0.5
  %v701 = vmul.f32 %v693, 0.5
  %v702 = vmul.f32 %v694, 0.5
  %v703 = vadd.f32 %v695, 0.5
  %v704 = vadd.f32 %v696, 0.5
  %v705 = vadd.f32 %v697, 0.5
  %v706 = vadd.f32 %v698, 0.5
  %v707 = vadd.f32 %v699, 0.5
  %v708 = vadd.f32 %v700, 0.5
  %v709 = vadd.f32 %v701, 0.5
  %v710 = vadd.f32 %v702, 0.5
  %v711 = vpack.c.bf16 %v703, %v703
  %v712 = vpack.c.bf16 %v704, %v704
  %v713 = vpack.c.bf16 %v705, %v705
  %v714 = vpack.c.bf16 %v706, %v706
  %v715 = vpack.c.bf16 %v707, %v707
  %v716 = vpack.c.bf16 %v708, %v708
  %v717 = vpack.c.bf16 %v709, %v709
  %v718 = vpack.c.bf16 %v710, %v710
  %719 = vst [vmem:[%s6] sm:$0xf] %v711
  %720 = vst [vmem:[%s6 + $0x4] sm:$0xf] %v712
  %721 = vst [vmem:[%s6 + $0x8] sm:$0xf] %v713
  %722 = vst [vmem:[%s6 + $0xc] sm:$0xf] %v714
  %723 = vst [vmem:[%s6 + $0x10] sm:$0xf] %v715
  %724 = vst [vmem:[%s6 + $0x14] sm:$0xf] %v716
  %725 = vst [vmem:[%s6 + $0x18] sm:$0xf] %v717
  %726 = vst [vmem:[%s6 + $0x1c] sm:$0xf] %v718
  // Predicated region
  $region37: #{dkt_forward.1} parent=0 // pred_check
    _
  $region38: #{dkt_forward.1} parent=0 // pred_check_branch
    %728 = sbr.rel (0) target = $region40
  $region39: #{dkt_forward.1} parent=0 // pred_region
    _
  $region40: #{dkt_forward.1} parent=0 // pred_fallthru
    _
  // Predicated region
  $region41: #{dkt_forward.1} parent=0 // pred_check
    _
  $region42: #{dkt_forward.1} parent=0 // pred_check_branch
    %730 = sbr.rel (0) target = $region44
  $region43: #{dkt_forward.1} parent=0 // pred_region
    _
  $region44: #{dkt_forward.1} parent=0 // pred_fallthru
    _

</llo_original>
